<compile_context>
chip_gen: v6e
topology: v6e:2x2x1
jax: 0.10.0
libtpu: 0.0.40
codegen_flags: <defaults>
</compile_context>

<pallas_src>
import jax
import jax.numpy as jnp
from jax.experimental import pallas as pl
from jax.experimental.pallas import tpu as pltpu

STATE_DIM = 4
HIDDEN_DIM = 64          # module default
NUM_LAYERS = 4
DT = 0.1
BATCH = 8

PAD = 128                              # lane-dense padded feature width
SLAB_ROWS = 3 * PAD + 3 * BATCH        # 3 padded weights + 3 pre-broadcast biases = 408


def resnet_kernel(x_ref, slab_ref, o_ref):
    # Static, 8-row-aligned slices of the packed parameter slab (loaded once,
    # reused across the unrolled layer loop).
    w1 = slab_ref[0:PAD, :]                                    # (128,128), rows 0..3  = W1
    w2 = slab_ref[PAD:2 * PAD, :]                              # (128,128), rows 0..63 = W2
    w3 = slab_ref[2 * PAD:3 * PAD, :]                          # (128,128), already scaled by DT
    b1 = slab_ref[3 * PAD:3 * PAD + BATCH, :]                  # (8,128) pre-broadcast bias
    b2 = slab_ref[3 * PAD + BATCH:3 * PAD + 2 * BATCH, :]      # (8,128)
    b3 = slab_ref[3 * PAD + 2 * BATCH:3 * PAD + 3 * BATCH, :]  # (8,128), scaled by DT

    x = x_ref[...]                                             # (BATCH, 128), padded lanes are 0
    # num_layers is a small static constant -> fully unrolled Python loop.
    for _ in range(NUM_LAYERS):
        h1 = jnp.tanh(jnp.dot(x, w1, preferred_element_type=jnp.float32) + b1)
        h2 = jnp.tanh(jnp.dot(h1, w2, preferred_element_type=jnp.float32) + b2)
        # dt already folded into W3/b3:  x <- x + dt * (h2 @ W3 + b3)
        x = x + jnp.dot(h2, w3, preferred_element_type=jnp.float32) + b3
    o_ref[...] = x


@jax.jit
def resnet_forward(x, slab):
    """x: (BATCH, STATE_DIM) f32, slab: packed params. Returns (BATCH, STATE_DIM)."""
    x_pad = jnp.zeros((BATCH, PAD), jnp.float32).at[:, :STATE_DIM].set(x)
    vmem = pl.BlockSpec(memory_space=pltpu.MemorySpace.VMEM)
    out = pl.pallas_call(
        resnet_kernel,
        out_shape=jax.ShapeDtypeStruct((BATCH, PAD), jnp.float32),
        in_specs=[vmem, vmem],
        out_specs=vmem,
        input_output_aliases={0: 0},   # reuse the padded x buffer for the output
    )(x_pad, slab)
    return out[:, :STATE_DIM]


def init_params(key):
    """Deterministic init matching the PyTorch module's parameter shapes.

    torch Linear weight is (out, in); here we store the transpose (in, out) so
    the kernel computes x @ W + b (== torch's x @ W.T + b).
    """
    ks = jax.random.split(key, 6)

    def uniform(k, shape, fan_in):
        bound = 1.0 / jnp.sqrt(jnp.float32(fan_in))
        return jax.random.uniform(k, shape, jnp.float32, -bound, bound)

    w1 = uniform(ks[0], (STATE_DIM, HIDDEN_DIM), STATE_DIM)
    b1 = uniform(ks[1], (HIDDEN_DIM,), STATE_DIM)
    w2 = uniform(ks[2], (HIDDEN_DIM, HIDDEN_DIM), HIDDEN_DIM)
    b2 = uniform(ks[3], (HIDDEN_DIM,), HIDDEN_DIM)
    w3 = uniform(ks[4], (HIDDEN_DIM, STATE_DIM), HIDDEN_DIM)
    b3 = uniform(ks[5], (STATE_DIM,), HIDDEN_DIM)
    return (w1, b1, w2, b2, w3, b3)


def pack_params(params):
    """Pack all parameters into one zero-padded (SLAB_ROWS, 128) f32 slab.

    Padded rows/columns are exactly zero so padded lanes of the state stay zero
    through tanh and the Euler updates (tanh(0)=0). dt is folded into W3/b3 here.
    """
    w1, b1, w2, b2, w3, b3 = params
    slab = jnp.zeros((SLAB_ROWS, PAD), jnp.float32)
    slab = slab.at[0:STATE_DIM, 0:HIDDEN_DIM].set(w1)
    slab = slab.at[PAD:PAD + HIDDEN_DIM, 0:HIDDEN_DIM].set(w2)
    slab = slab.at[2 * PAD:2 * PAD + HIDDEN_DIM, 0:STATE_DIM].set(w3 * DT)
    slab = slab.at[3 * PAD:3 * PAD + BATCH, 0:HIDDEN_DIM].set(
        jnp.broadcast_to(b1, (BATCH, HIDDEN_DIM)))
    slab = slab.at[3 * PAD + BATCH:3 * PAD + 2 * BATCH, 0:HIDDEN_DIM].set(
        jnp.broadcast_to(b2, (BATCH, HIDDEN_DIM)))
    slab = slab.at[3 * PAD + 2 * BATCH:3 * PAD + 3 * BATCH, 0:STATE_DIM].set(
        jnp.broadcast_to(b3 * DT, (BATCH, STATE_DIM)))
    return slab


def resnet_reference(x, params):
    """Pure-JAX reference matching the PyTorch forward exactly."""
    w1, b1, w2, b2, w3, b3 = params
    for _ in range(NUM_LAYERS):
        h1 = jnp.tanh(x @ w1 + b1)
        h2 = jnp.tanh(h1 @ w2 + b2)
        dx = h2 @ w3 + b3
        x = x + DT * dx
    return x


if __name__ == "__main__":
    key = jax.random.PRNGKey(0)
    kx, kp = jax.random.split(key)
    x0 = jax.random.normal(kx, (BATCH, STATE_DIM), dtype=jnp.float32)
    params = init_params(kp)
    slab = pack_params(params)

    out = resnet_forward(x0, slab)
    out = jax.block_until_ready(out)

    ref = resnet_reference(x0, params)
    assert out.shape == (BATCH, STATE_DIM)
    assert jnp.allclose(out, ref, atol=1e-5, rtol=1e-5)

    print("KERNEL_OK")
</pallas_src>

<mosaic_0001>
module attributes {stable_mosaic.version = 11 : i64} {
  func.func @resnet_kernel(%arg0: memref<8x128xf32, #tpu.memory_space<vmem>>, %arg1: memref<408x128xf32, #tpu.memory_space<vmem>>, %arg2: memref<8x128xf32, #tpu.memory_space<vmem>>) attributes {dimension_semantics = [], scalar_prefetch = 0 : i64, scratch_operands = 0 : i64, tpu.core_type = #tpu.core_type<tc>} {
    %c0 = arith.constant 0 : index
    %c0_0 = arith.constant 0 : index
    %0 = vector.load %arg1[%c0, %c0_0] : memref<408x128xf32, #tpu.memory_space<vmem>>, vector<128x128xf32>
    %c128 = arith.constant 128 : index
    %c0_1 = arith.constant 0 : index
    %1 = vector.load %arg1[%c128, %c0_1] : memref<408x128xf32, #tpu.memory_space<vmem>>, vector<128x128xf32>
    %c256 = arith.constant 256 : index
    %c0_2 = arith.constant 0 : index
    %2 = vector.load %arg1[%c256, %c0_2] : memref<408x128xf32, #tpu.memory_space<vmem>>, vector<128x128xf32>
    %c384 = arith.constant 384 : index
    %c0_3 = arith.constant 0 : index
    %3 = vector.load %arg1[%c384, %c0_3] : memref<408x128xf32, #tpu.memory_space<vmem>>, vector<8x128xf32>
    %c392 = arith.constant 392 : index
    %c0_4 = arith.constant 0 : index
    %4 = vector.load %arg1[%c392, %c0_4] : memref<408x128xf32, #tpu.memory_space<vmem>>, vector<8x128xf32>
    %c400 = arith.constant 400 : index
    %c0_5 = arith.constant 0 : index
    %5 = vector.load %arg1[%c400, %c0_5] : memref<408x128xf32, #tpu.memory_space<vmem>>, vector<8x128xf32>
    %c0_6 = arith.constant 0 : index
    %c0_7 = arith.constant 0 : index
    %6 = vector.load %arg0[%c0_6, %c0_7] : memref<8x128xf32, #tpu.memory_space<vmem>>, vector<8x128xf32>
    %cst = arith.constant dense<0.000000e+00> : vector<8x128xf32>
    %7 = tpu.matmul %6, %0, %cst {dimension_numbers = #tpu.dot_dimension_numbers<[1], [0], [0], [1], [0, 0, 1, 1], [], []>} : vector<8x128xf32>, vector<128x128xf32>, vector<8x128xf32> -> vector<8x128xf32>
    %8 = arith.addf %7, %3 : vector<8x128xf32>
    %9 = math.tanh %8 : vector<8x128xf32>
    %cst_8 = arith.constant dense<0.000000e+00> : vector<8x128xf32>
    %10 = tpu.matmul %9, %1, %cst_8 {dimension_numbers = #tpu.dot_dimension_numbers<[1], [0], [0], [1], [0, 0, 1, 1], [], []>} : vector<8x128xf32>, vector<128x128xf32>, vector<8x128xf32> -> vector<8x128xf32>
    %11 = arith.addf %10, %4 : vector<8x128xf32>
    %12 = math.tanh %11 : vector<8x128xf32>
    %cst_9 = arith.constant dense<0.000000e+00> : vector<8x128xf32>
    %13 = tpu.matmul %12, %2, %cst_9 {dimension_numbers = #tpu.dot_dimension_numbers<[1], [0], [0], [1], [0, 0, 1, 1], [], []>} : vector<8x128xf32>, vector<128x128xf32>, vector<8x128xf32> -> vector<8x128xf32>
    %14 = arith.addf %6, %13 : vector<8x128xf32>
    %15 = arith.addf %14, %5 : vector<8x128xf32>
    %cst_10 = arith.constant dense<0.000000e+00> : vector<8x128xf32>
    %16 = tpu.matmul %15, %0, %cst_10 {dimension_numbers = #tpu.dot_dimension_numbers<[1], [0], [0], [1], [0, 0, 1, 1], [], []>} : vector<8x128xf32>, vector<128x128xf32>, vector<8x128xf32> -> vector<8x128xf32>
    %17 = arith.addf %16, %3 : vector<8x128xf32>
    %18 = math.tanh %17 : vector<8x128xf32>
    %cst_11 = arith.constant dense<0.000000e+00> : vector<8x128xf32>
    %19 = tpu.matmul %18, %1, %cst_11 {dimension_numbers = #tpu.dot_dimension_numbers<[1], [0], [0], [1], [0, 0, 1, 1], [], []>} : vector<8x128xf32>, vector<128x128xf32>, vector<8x128xf32> -> vector<8x128xf32>
    %20 = arith.addf %19, %4 : vector<8x128xf32>
    %21 = math.tanh %20 : vector<8x128xf32>
    %cst_12 = arith.constant dense<0.000000e+00> : vector<8x128xf32>
    %22 = tpu.matmul %21, %2, %cst_12 {dimension_numbers = #tpu.dot_dimension_numbers<[1], [0], [0], [1], [0, 0, 1, 1], [], []>} : vector<8x128xf32>, vector<128x128xf32>, vector<8x128xf32> -> vector<8x128xf32>
    %23 = arith.addf %15, %22 : vector<8x128xf32>
    %24 = arith.addf %23, %5 : vector<8x128xf32>
    %cst_13 = arith.constant dense<0.000000e+00> : vector<8x128xf32>
    %25 = tpu.matmul %24, %0, %cst_13 {dimension_numbers = #tpu.dot_dimension_numbers<[1], [0], [0], [1], [0, 0, 1, 1], [], []>} : vector<8x128xf32>, vector<128x128xf32>, vector<8x128xf32> -> vector<8x128xf32>
    %26 = arith.addf %25, %3 : vector<8x128xf32>
    %27 = math.tanh %26 : vector<8x128xf32>
    %cst_14 = arith.constant dense<0.000000e+00> : vector<8x128xf32>
    %28 = tpu.matmul %27, %1, %cst_14 {dimension_numbers = #tpu.dot_dimension_numbers<[1], [0], [0], [1], [0, 0, 1, 1], [], []>} : vector<8x128xf32>, vector<128x128xf32>, vector<8x128xf32> -> vector<8x128xf32>
    %29 = arith.addf %28, %4 : vector<8x128xf32>
    %30 = math.tanh %29 : vector<8x128xf32>
    %cst_15 = arith.constant dense<0.000000e+00> : vector<8x128xf32>
    %31 = tpu.matmul %30, %2, %cst_15 {dimension_numbers = #tpu.dot_dimension_numbers<[1], [0], [0], [1], [0, 0, 1, 1], [], []>} : vector<8x128xf32>, vector<128x128xf32>, vector<8x128xf32> -> vector<8x128xf32>
    %32 = arith.addf %24, %31 : vector<8x128xf32>
    %33 = arith.addf %32, %5 : vector<8x128xf32>
    %cst_16 = arith.constant dense<0.000000e+00> : vector<8x128xf32>
    %34 = tpu.matmul %33, %0, %cst_16 {dimension_numbers = #tpu.dot_dimension_numbers<[1], [0], [0], [1], [0, 0, 1, 1], [], []>} : vector<8x128xf32>, vector<128x128xf32>, vector<8x128xf32> -> vector<8x128xf32>
    %35 = arith.addf %34, %3 : vector<8x128xf32>
    %36 = math.tanh %35 : vector<8x128xf32>
    %cst_17 = arith.constant dense<0.000000e+00> : vector<8x128xf32>
    %37 = tpu.matmul %36, %1, %cst_17 {dimension_numbers = #tpu.dot_dimension_numbers<[1], [0], [0], [1], [0, 0, 1, 1], [], []>} : vector<8x128xf32>, vector<128x128xf32>, vector<8x128xf32> -> vector<8x128xf32>
    %38 = arith.addf %37, %4 : vector<8x128xf32>
    %39 = math.tanh %38 : vector<8x128xf32>
    %cst_18 = arith.constant dense<0.000000e+00> : vector<8x128xf32>
    %40 = tpu.matmul %39, %2, %cst_18 {dimension_numbers = #tpu.dot_dimension_numbers<[1], [0], [0], [1], [0, 0, 1, 1], [], []>} : vector<8x128xf32>, vector<128x128xf32>, vector<8x128xf32> -> vector<8x128xf32>
    %41 = arith.addf %33, %40 : vector<8x128xf32>
    %42 = arith.addf %41, %5 : vector<8x128xf32>
    %c0_19 = arith.constant 0 : index
    %c0_20 = arith.constant 0 : index
    %43 = vector.load %arg2[%c0_19, %c0_20] : memref<8x128xf32, #tpu.memory_space<vmem>>, vector<8x128xf32>
    tpu.vector_store %arg2[%c0_19, %c0_20], %42 {strides = array<i32>} : memref<8x128xf32, #tpu.memory_space<vmem>>, vector<8x128xf32>,
    return
  }
}

</mosaic_0001>

<llo_original>
// kernel: resnet_forward.1
$region0: #{resnet_forward.1}
  #allocation0 [shape = 'u32[]', space=smem, size = 0x4, offset = 0x4, fixed_abs, tag = 'smem constant byte address 0x4 - core index']
  #allocation1 [shape = 'u32[144,128]{1,0:T(1,128)}', space=vmem, size = 0x12000, scoped, tag = 'internal scratch']
  %s0 = inlined_call_operand.vmem [shape: f32[8,128], index: 0, kind: input, shape index: {}, may-alias: {0,2}]
  %s1 = inlined_call_operand.hbm [shape: f32[408,128], index: 1, kind: input, shape index: {}]
  %s2 = inlined_call_operand.vmem [shape: f32[8,128], index: 2, kind: output, shape index: {}, may-alias: {0,2}]
  %s3 = sld [smem:[#allocation0]]
  $region22: #{resnet_forward.1} parent=0
    _
  %s5 = ssub.s32 1, %s3
  %s6 = scalar_select 0, %s5, %s3
  $region1: #{resnet_forward.1} parent=0
    #allocation2 [shape = 'u8[208896]{0}', space=vmem, size = 0x33000, scoped, tag = 'input window, operand 1, single buffered']
    #allocation3 [shape = 's32[1]{0}', space=sflag, size = 0x4, scoped, tag = 'scoped memory for resnet_forward.1']
    %7 = vsyncpa [#allocation3], 0
    // Predicated region
    $region2: #{resnet_forward.1} parent=1 // pred_check
      _
    $region3: #{resnet_forward.1} parent=1 // pred_check_branch
      %9 = sbr.rel (0) target = $region5
    $region4: #{resnet_forward.1} parent=1 // pred_region
      _
    $region5: #{resnet_forward.1} parent=1 // pred_fallthru
      _
    // Predicated region
    $region6: #{resnet_forward.1} parent=1 // pred_check
      _
    $region7: #{resnet_forward.1} parent=1 // pred_check_branch
      %11 = sbr.rel (0) target = $region9
    $region8: #{resnet_forward.1} parent=1 // pred_region
      %s13 = ssub.s32 6528, 6528
      %14 = vsyncadd [#allocation3], %s13
      %s15 = sshll.u32 [#allocation2], 4
      %s16 = int_to_ptr.vmem [resolvable:$true] %s15
      %21 = dma.hbm_to_vmem [thread:$0]  %s1, 6528, %s16, [#allocation3], 128, 128, 8
    $region9: #{resnet_forward.1} parent=1 // pred_fallthru
      _
    // Predicated region
    $region10: #{resnet_forward.1} parent=1 // pred_check
      _
    $region11: #{resnet_forward.1} parent=1 // pred_check_branch
      %23 = sbr.rel (0) target = $region13
    $region12: #{resnet_forward.1} parent=1 // pred_region
      %24 = dma.done [#allocation3], 6528
    $region13: #{resnet_forward.1} parent=1 // pred_fallthru
      _
    %v25 = vld [vmem:[#allocation2] sm:$0xff]
    %v26 = vld [vmem:[#allocation2 + $0x8] sm:$0xff]
    %v27 = vld [vmem:[#allocation2 + $0x10] sm:$0xff]
    %v28 = vld [vmem:[#allocation2 + $0x18] sm:$0xff]
    %v29 = vld [vmem:[#allocation2 + $0x20] sm:$0xff]
    %v30 = vld [vmem:[#allocation2 + $0x28] sm:$0xff]
    %v31 = vld [vmem:[#allocation2 + $0x30] sm:$0xff]
    %v32 = vld [vmem:[#allocation2 + $0x38] sm:$0xff]
    %v33 = vld [vmem:[#allocation2 + $0x40] sm:$0xff]
    %v34 = vld [vmem:[#allocation2 + $0x48] sm:$0xff]
    %v35 = vld [vmem:[#allocation2 + $0x50] sm:$0xff]
    %v36 = vld [vmem:[#allocation2 + $0x58] sm:$0xff]
    %v37 = vld [vmem:[#allocation2 + $0x60] sm:$0xff]
    %v38 = vld [vmem:[#allocation2 + $0x68] sm:$0xff]
    %v39 = vld [vmem:[#allocation2 + $0x70] sm:$0xff]
    %v40 = vld [vmem:[#allocation2 + $0x78] sm:$0xff]
    %v41 = vld [vmem:[#allocation2 + $0x80] sm:$0xff]
    %v42 = vld [vmem:[#allocation2 + $0x88] sm:$0xff]
    %v43 = vld [vmem:[#allocation2 + $0x90] sm:$0xff]
    %v44 = vld [vmem:[#allocation2 + $0x98] sm:$0xff]
    %v45 = vld [vmem:[#allocation2 + $0xa0] sm:$0xff]
    %v46 = vld [vmem:[#allocation2 + $0xa8] sm:$0xff]
    %v47 = vld [vmem:[#allocation2 + $0xb0] sm:$0xff]
    %v48 = vld [vmem:[#allocation2 + $0xb8] sm:$0xff]
    %v49 = vld [vmem:[#allocation2 + $0xc0] sm:$0xff]
    %v50 = vld [vmem:[#allocation2 + $0xc8] sm:$0xff]
    %v51 = vld [vmem:[#allocation2 + $0xd0] sm:$0xff]
    %v52 = vld [vmem:[#allocation2 + $0xd8] sm:$0xff]
    %v53 = vld [vmem:[#allocation2 + $0xe0] sm:$0xff]
    %v54 = vld [vmem:[#allocation2 + $0xe8] sm:$0xff]
    %v55 = vld [vmem:[#allocation2 + $0xf0] sm:$0xff]
    %v56 = vld [vmem:[#allocation2 + $0xf8] sm:$0xff]
    %v57 = vld [vmem:[#allocation2 + $0x100] sm:$0xff]
    %v58 = vld [vmem:[#allocation2 + $0x108] sm:$0xff]
    %v59 = vld [vmem:[#allocation2 + $0x110] sm:$0xff]
    %v60 = vld [vmem:[#allocation2 + $0x118] sm:$0xff]
    %v61 = vld [vmem:[#allocation2 + $0x120] sm:$0xff]
    %v62 = vld [vmem:[#allocation2 + $0x128] sm:$0xff]
    %v63 = vld [vmem:[#allocation2 + $0x130] sm:$0xff]
    %v64 = vld [vmem:[#allocation2 + $0x138] sm:$0xff]
    %v65 = vld [vmem:[#allocation2 + $0x140] sm:$0xff]
    %v66 = vld [vmem:[#allocation2 + $0x148] sm:$0xff]
    %v67 = vld [vmem:[#allocation2 + $0x150] sm:$0xff]
    %v68 = vld [vmem:[#allocation2 + $0x158] sm:$0xff]
    %v69 = vld [vmem:[#allocation2 + $0x160] sm:$0xff]
    %v70 = vld [vmem:[#allocation2 + $0x168] sm:$0xff]
    %v71 = vld [vmem:[#allocation2 + $0x170] sm:$0xff]
    %v72 = vld [vmem:[#allocation2 + $0x178] sm:$0xff]
    %v73 = vld [vmem:[#allocation2 + $0x180] sm:$0xff]
    %v74 = vld [vmem:[#allocation2 + $0x188] sm:$0xff]
    %v75 = vld [vmem:[#allocation2 + $0x190] sm:$0xff]
    %v76 = vld [vmem:[%s0] sm:$0xff]
    %77 = vmatprep.subr.mxu0 0.0
    %78 = vmatpush1.msra.mxu0 %v40
    %79 = vmatprep.subr.mxu0 0.0
    %80 = vmatpush1.msra.mxu0 %v39
    %81 = vmatprep.subr.mxu0 0.0
    %82 = vmatpush1.msra.mxu0 %v38
    %83 = vmatprep.subr.mxu0 0.0
    %84 = vmatpush1.msra.mxu0 %v37
    %85 = vmatprep.subr.mxu0 0.0
    %86 = vmatpush1.msra.mxu0 %v36
    %87 = vmatprep.subr.mxu0 0.0
    %88 = vmatpush1.msra.mxu0 %v35
    %89 = vmatprep.subr.mxu0 0.0
    %90 = vmatpush1.msra.mxu0 %v34
    %91 = vmatprep.subr.mxu0 0.0
    %92 = vmatpush1.msra.mxu0 %v33
    %93 = vmatprep.subr.mxu0 0.0
    %94 = vmatpush1.msra.mxu0 %v32
    %95 = vmatprep.subr.mxu0 0.0
    %96 = vmatpush1.msra.mxu0 %v31
    %97 = vmatprep.subr.mxu0 0.0
    %98 = vmatpush1.msra.mxu0 %v30
    %99 = vmatprep.subr.mxu0 0.0
    %100 = vmatpush1.msra.mxu0 %v29
    %101 = vmatprep.subr.mxu0 0.0
    %102 = vmatpush1.msra.mxu0 %v28
    %103 = vmatprep.subr.mxu0 0.0
    %104 = vmatpush1.msra.mxu0 %v27
    %105 = vmatprep.subr.mxu0 0.0
    %106 = vmatpush1.msra.mxu0 %v26
    %107 = vmatprep.subr.mxu0 0.0
    %108 = vmatpush1.msra.mxu0 %v25
    %109 = vmatprep.subr.mxu0 0.0
    %110 = vmatpush2.msra.mxu0 0.0
    %111 = vmatprep.subr.mxu0 0.0
    %112 = vmatpush2.msra.mxu0 0.0
    %113 = vmatprep.subr.mxu0 0.0
    %114 = vmatpush2.msra.mxu0 0.0
    %115 = vmatprep.subr.mxu0 0.0
    %116 = vmatpush2.msra.mxu0 0.0
    %117 = vmatprep.subr.mxu0 0.0
    %118 = vmatpush2.msra.mxu0 0.0
    %119 = vmatprep.subr.mxu0 0.0
    %120 = vmatpush2.msra.mxu0 0.0
    %121 = vmatprep.subr.mxu0 0.0
    %122 = vmatpush2.msra.mxu0 0.0
    %123 = vmatprep.subr.mxu0 0.0
    %124 = vmatpush2.msra.mxu0 0.0
    %125 = vmatprep.subr.mxu0 0.0
    %126 = vmatpush2.msra.mxu0 0.0
    %127 = vmatprep.subr.mxu0 0.0
    %128 = vmatpush2.msra.mxu0 0.0
    %129 = vmatprep.subr.mxu0 0.0
    %130 = vmatpush2.msra.mxu0 0.0
    %131 = vmatprep.subr.mxu0 0.0
    %132 = vmatpush2.msra.mxu0 0.0
    %133 = vmatprep.subr.mxu0 0.0
    %134 = vmatpush2.msra.mxu0 0.0
    %135 = vmatprep.subr.mxu0 0.0
    %136 = vmatpush2.msra.mxu0 0.0
    %137 = vmatprep.subr.mxu0 0.0
    %138 = vmatpush2.msra.mxu0 0.0
    %139 = vmatprep.subr.mxu0 0.0
    %140 = vmatpush2.msra.mxu0 0.0
    %141 = vmatprep.mubr.f32.mxu0 0.0
    %142 = vmatmul.mubr.f32.gmra.mxu0 %v76
    %v143 = vpop.f32.mrf.mxu0
    %v144 = vadd.f32 %v73, %v143
    %v145 = vpop.f32.mrf.mxu0
    %146 = vdwg.mxu0
    %v147 = vtanh.pop %v144
    %148 = vmatprep.subr.mxu0 0.0
    %149 = vmatpush1.msra.mxu0 %v56
    %150 = vmatprep.subr.mxu0 0.0
    %151 = vmatpush1.msra.mxu0 %v55
    %152 = vmatprep.subr.mxu0 0.0
    %153 = vmatpush1.msra.mxu0 %v54
    %154 = vmatprep.subr.mxu0 0.0
    %155 = vmatpush1.msra.mxu0 %v53
    %156 = vmatprep.subr.mxu0 0.0
    %157 = vmatpush1.msra.mxu0 %v52
    %158 = vmatprep.subr.mxu0 0.0
    %159 = vmatpush1.msra.mxu0 %v51
    %160 = vmatprep.subr.mxu0 0.0
    %161 = vmatpush1.msra.mxu0 %v50
    %162 = vmatprep.subr.mxu0 0.0
    %163 = vmatpush1.msra.mxu0 %v49
    %164 = vmatprep.subr.mxu0 0.0
    %165 = vmatpush1.msra.mxu0 %v48
    %166 = vmatprep.subr.mxu0 0.0
    %167 = vmatpush1.msra.mxu0 %v47
    %168 = vmatprep.subr.mxu0 0.0
    %169 = vmatpush1.msra.mxu0 %v46
    %170 = vmatprep.subr.mxu0 0.0
    %171 = vmatpush1.msra.mxu0 %v45
    %172 = vmatprep.subr.mxu0 0.0
    %173 = vmatpush1.msra.mxu0 %v44
    %174 = vmatprep.subr.mxu0 0.0
    %175 = vmatpush1.msra.mxu0 %v43
    %176 = vmatprep.subr.mxu0 0.0
    %177 = vmatpush1.msra.mxu0 %v42
    %178 = vmatprep.subr.mxu0 0.0
    %179 = vmatpush1.msra.mxu0 %v41
    %180 = vmatprep.subr.mxu0 0.0
    %181 = vmatpush2.msra.mxu0 0.0
    %182 = vmatprep.subr.mxu0 0.0
    %183 = vmatpush2.msra.mxu0 0.0
    %184 = vmatprep.subr.mxu0 0.0
    %185 = vmatpush2.msra.mxu0 0.0
    %186 = vmatprep.subr.mxu0 0.0
    %187 = vmatpush2.msra.mxu0 0.0
    %188 = vmatprep.subr.mxu0 0.0
    %189 = vmatpush2.msra.mxu0 0.0
    %190 = vmatprep.subr.mxu0 0.0
    %191 = vmatpush2.msra.mxu0 0.0
    %192 = vmatprep.subr.mxu0 0.0
    %193 = vmatpush2.msra.mxu0 0.0
    %194 = vmatprep.subr.mxu0 0.0
    %195 = vmatpush2.msra.mxu0 0.0
    %196 = vmatprep.subr.mxu0 0.0
    %197 = vmatpush2.msra.mxu0 0.0
    %198 = vmatprep.subr.mxu0 0.0
    %199 = vmatpush2.msra.mxu0 0.0
    %200 = vmatprep.subr.mxu0 0.0
    %201 = vmatpush2.msra.mxu0 0.0
    %202 = vmatprep.subr.mxu0 0.0
    %203 = vmatpush2.msra.mxu0 0.0
    %204 = vmatprep.subr.mxu0 0.0
    %205 = vmatpush2.msra.mxu0 0.0
    %206 = vmatprep.subr.mxu0 0.0
    %207 = vmatpush2.msra.mxu0 0.0
    %208 = vmatprep.subr.mxu0 0.0
    %209 = vmatpush2.msra.mxu0 0.0
    %210 = vmatprep.subr.mxu0 0.0
    %211 = vmatpush2.msra.mxu0 0.0
    %212 = vmatprep.mubr.f32.mxu0 0.0
    %213 = vmatmul.mubr.f32.gmra.mxu0 %v147
    %v214 = vpop.f32.mrf.mxu0
    %v215 = vadd.f32 %v74, %v214
    %v216 = vpop.f32.mrf.mxu0
    %217 = vdwg.mxu0
    %v218 = vtanh.pop %v215
    %219 = vmatprep.subr.mxu0 0.0
    %220 = vmatpush1.msra.mxu0 %v72
    %221 = vmatprep.subr.mxu0 0.0
    %222 = vmatpush1.msra.mxu0 %v71
    %223 = vmatprep.subr.mxu0 0.0
    %224 = vmatpush1.msra.mxu0 %v70
    %225 = vmatprep.subr.mxu0 0.0
    %226 = vmatpush1.msra.mxu0 %v69
    %227 = vmatprep.subr.mxu0 0.0
    %228 = vmatpush1.msra.mxu0 %v68
    %229 = vmatprep.subr.mxu0 0.0
    %230 = vmatpush1.msra.mxu0 %v67
    %231 = vmatprep.subr.mxu0 0.0
    %232 = vmatpush1.msra.mxu0 %v66
    %233 = vmatprep.subr.mxu0 0.0
    %234 = vmatpush1.msra.mxu0 %v65
    %235 = vmatprep.subr.mxu0 0.0
    %236 = vmatpush1.msra.mxu0 %v64
    %237 = vmatprep.subr.mxu0 0.0
    %238 = vmatpush1.msra.mxu0 %v63
    %239 = vmatprep.subr.mxu0 0.0
    %240 = vmatpush1.msra.mxu0 %v62
    %241 = vmatprep.subr.mxu0 0.0
    %242 = vmatpush1.msra.mxu0 %v61
    %243 = vmatprep.subr.mxu0 0.0
    %244 = vmatpush1.msra.mxu0 %v60
    %245 = vmatprep.subr.mxu0 0.0
    %246 = vmatpush1.msra.mxu0 %v59
    %247 = vmatprep.subr.mxu0 0.0
    %248 = vmatpush1.msra.mxu0 %v58
    %249 = vmatprep.subr.mxu0 0.0
    %250 = vmatpush1.msra.mxu0 %v57
    %251 = vmatprep.subr.mxu0 0.0
    %252 = vmatpush2.msra.mxu0 0.0
    %253 = vmatprep.subr.mxu0 0.0
    %254 = vmatpush2.msra.mxu0 0.0
    %255 = vmatprep.subr.mxu0 0.0
    %256 = vmatpush2.msra.mxu0 0.0
    %257 = vmatprep.subr.mxu0 0.0
    %258 = vmatpush2.msra.mxu0 0.0
    %259 = vmatprep.subr.mxu0 0.0
    %260 = vmatpush2.msra.mxu0 0.0
    %261 = vmatprep.subr.mxu0 0.0
    %262 = vmatpush2.msra.mxu0 0.0
    %263 = vmatprep.subr.mxu0 0.0
    %264 = vmatpush2.msra.mxu0 0.0
    %265 = vmatprep.subr.mxu0 0.0
    %266 = vmatpush2.msra.mxu0 0.0
    %267 = vmatprep.subr.mxu0 0.0
    %268 = vmatpush2.msra.mxu0 0.0
    %269 = vmatprep.subr.mxu0 0.0
    %270 = vmatpush2.msra.mxu0 0.0
    %271 = vmatprep.subr.mxu0 0.0
    %272 = vmatpush2.msra.mxu0 0.0
    %273 = vmatprep.subr.mxu0 0.0
    %274 = vmatpush2.msra.mxu0 0.0
    %275 = vmatprep.subr.mxu0 0.0
    %276 = vmatpush2.msra.mxu0 0.0
    %277 = vmatprep.subr.mxu0 0.0
    %278 = vmatpush2.msra.mxu0 0.0
    %279 = vmatprep.subr.mxu0 0.0
    %280 = vmatpush2.msra.mxu0 0.0
    %281 = vmatprep.subr.mxu0 0.0
    %282 = vmatpush2.msra.mxu0 0.0
    %283 = vmatprep.mubr.f32.mxu0 0.0
    %284 = vmatmul.mubr.f32.gmra.mxu0 %v218
    %v285 = vpop.f32.mrf.mxu0
    %v286 = vadd.f32 0.0, %v285
    %v287 = vpop.f32.mrf.mxu0
    %288 = vdwg.mxu0
    %v289 = vadd.f32 %v76, %v286
    %v290 = vadd.f32 %v289, %v75
    %291 = vmatprep.subr.mxu0 0.0
    %292 = vmatpush1.msra.mxu0 %v40
    %293 = vmatprep.subr.mxu0 0.0
    %294 = vmatpush1.msra.mxu0 %v39
    %295 = vmatprep.subr.mxu0 0.0
    %296 = vmatpush1.msra.mxu0 %v38
    %297 = vmatprep.subr.mxu0 0.0
    %298 = vmatpush1.msra.mxu0 %v37
    %299 = vmatprep.subr.mxu0 0.0
    %300 = vmatpush1.msra.mxu0 %v36
    %301 = vmatprep.subr.mxu0 0.0
    %302 = vmatpush1.msra.mxu0 %v35
    %303 = vmatprep.subr.mxu0 0.0
    %304 = vmatpush1.msra.mxu0 %v34
    %305 = vmatprep.subr.mxu0 0.0
    %306 = vmatpush1.msra.mxu0 %v33
    %307 = vmatprep.subr.mxu0 0.0
    %308 = vmatpush1.msra.mxu0 %v32
    %309 = vmatprep.subr.mxu0 0.0
    %310 = vmatpush1.msra.mxu0 %v31
    %311 = vmatprep.subr.mxu0 0.0
    %312 = vmatpush1.msra.mxu0 %v30
    %313 = vmatprep.subr.mxu0 0.0
    %314 = vmatpush1.msra.mxu0 %v29
    %315 = vmatprep.subr.mxu0 0.0
    %316 = vmatpush1.msra.mxu0 %v28
    %317 = vmatprep.subr.mxu0 0.0
    %318 = vmatpush1.msra.mxu0 %v27
    %319 = vmatprep.subr.mxu0 0.0
    %320 = vmatpush1.msra.mxu0 %v26
    %321 = vmatprep.subr.mxu0 0.0
    %322 = vmatpush1.msra.mxu0 %v25
    %323 = vmatprep.subr.mxu0 0.0
    %324 = vmatpush2.msra.mxu0 0.0
    %325 = vmatprep.subr.mxu0 0.0
    %326 = vmatpush2.msra.mxu0 0.0
    %327 = vmatprep.subr.mxu0 0.0
    %328 = vmatpush2.msra.mxu0 0.0
    %329 = vmatprep.subr.mxu0 0.0
    %330 = vmatpush2.msra.mxu0 0.0
    %331 = vmatprep.subr.mxu0 0.0
    %332 = vmatpush2.msra.mxu0 0.0
    %333 = vmatprep.subr.mxu0 0.0
    %334 = vmatpush2.msra.mxu0 0.0
    %335 = vmatprep.subr.mxu0 0.0
    %336 = vmatpush2.msra.mxu0 0.0
    %337 = vmatprep.subr.mxu0 0.0
    %338 = vmatpush2.msra.mxu0 0.0
    %339 = vmatprep.subr.mxu0 0.0
    %340 = vmatpush2.msra.mxu0 0.0
    %341 = vmatprep.subr.mxu0 0.0
    %342 = vmatpush2.msra.mxu0 0.0
    %343 = vmatprep.subr.mxu0 0.0
    %344 = vmatpush2.msra.mxu0 0.0
    %345 = vmatprep.subr.mxu0 0.0
    %346 = vmatpush2.msra.mxu0 0.0
    %347 = vmatprep.subr.mxu0 0.0
    %348 = vmatpush2.msra.mxu0 0.0
    %349 = vmatprep.subr.mxu0 0.0
    %350 = vmatpush2.msra.mxu0 0.0
    %351 = vmatprep.subr.mxu0 0.0
    %352 = vmatpush2.msra.mxu0 0.0
    %353 = vmatprep.subr.mxu0 0.0
    %354 = vmatpush2.msra.mxu0 0.0
    %355 = vmatprep.mubr.f32.mxu0 0.0
    %356 = vmatmul.mubr.f32.gmra.mxu0 %v290
    %v357 = vpop.f32.mrf.mxu0
    %v358 = vadd.f32 %v73, %v357
    %v359 = vpop.f32.mrf.mxu0
    %360 = vdwg.mxu0
    %v361 = vtanh.pop %v358
    %362 = vmatprep.subr.mxu0 0.0
    %363 = vmatpush1.msra.mxu0 %v56
    %364 = vmatprep.subr.mxu0 0.0
    %365 = vmatpush1.msra.mxu0 %v55
    %366 = vmatprep.subr.mxu0 0.0
    %367 = vmatpush1.msra.mxu0 %v54
    %368 = vmatprep.subr.mxu0 0.0
    %369 = vmatpush1.msra.mxu0 %v53
    %370 = vmatprep.subr.mxu0 0.0
    %371 = vmatpush1.msra.mxu0 %v52
    %372 = vmatprep.subr.mxu0 0.0
    %373 = vmatpush1.msra.mxu0 %v51
    %374 = vmatprep.subr.mxu0 0.0
    %375 = vmatpush1.msra.mxu0 %v50
    %376 = vmatprep.subr.mxu0 0.0
    %377 = vmatpush1.msra.mxu0 %v49
    %378 = vmatprep.subr.mxu0 0.0
    %379 = vmatpush1.msra.mxu0 %v48
    %380 = vmatprep.subr.mxu0 0.0
    %381 = vmatpush1.msra.mxu0 %v47
    %382 = vmatprep.subr.mxu0 0.0
    %383 = vmatpush1.msra.mxu0 %v46
    %384 = vmatprep.subr.mxu0 0.0
    %385 = vmatpush1.msra.mxu0 %v45
    %386 = vmatprep.subr.mxu0 0.0
    %387 = vmatpush1.msra.mxu0 %v44
    %388 = vmatprep.subr.mxu0 0.0
    %389 = vmatpush1.msra.mxu0 %v43
    %390 = vmatprep.subr.mxu0 0.0
    %391 = vmatpush1.msra.mxu0 %v42
    %392 = vmatprep.subr.mxu0 0.0
    %393 = vmatpush1.msra.mxu0 %v41
    %394 = vmatprep.subr.mxu0 0.0
    %395 = vmatpush2.msra.mxu0 0.0
    %396 = vmatprep.subr.mxu0 0.0
    %397 = vmatpush2.msra.mxu0 0.0
    %398 = vmatprep.subr.mxu0 0.0
    %399 = vmatpush2.msra.mxu0 0.0
    %400 = vmatprep.subr.mxu0 0.0
    %401 = vmatpush2.msra.mxu0 0.0
    %402 = vmatprep.subr.mxu0 0.0
    %403 = vmatpush2.msra.mxu0 0.0
    %404 = vmatprep.subr.mxu0 0.0
    %405 = vmatpush2.msra.mxu0 0.0
    %406 = vmatprep.subr.mxu0 0.0
    %407 = vmatpush2.msra.mxu0 0.0
    %408 = vmatprep.subr.mxu0 0.0
    %409 = vmatpush2.msra.mxu0 0.0
    %410 = vmatprep.subr.mxu0 0.0
    %411 = vmatpush2.msra.mxu0 0.0
    %412 = vmatprep.subr.mxu0 0.0
    %413 = vmatpush2.msra.mxu0 0.0
    %414 = vmatprep.subr.mxu0 0.0
    %415 = vmatpush2.msra.mxu0 0.0
    %416 = vmatprep.subr.mxu0 0.0
    %417 = vmatpush2.msra.mxu0 0.0
    %418 = vmatprep.subr.mxu0 0.0
    %419 = vmatpush2.msra.mxu0 0.0
    %420 = vmatprep.subr.mxu0 0.0
    %421 = vmatpush2.msra.mxu0 0.0
    %422 = vmatprep.subr.mxu0 0.0
    %423 = vmatpush2.msra.mxu0 0.0
    %424 = vmatprep.subr.mxu0 0.0
    %425 = vmatpush2.msra.mxu0 0.0
    %426 = vmatprep.mubr.f32.mxu0 0.0
    %427 = vmatmul.mubr.f32.gmra.mxu0 %v361
    %v428 = vpop.f32.mrf.mxu0
    %v429 = vadd.f32 %v74, %v428
    %v430 = vpop.f32.mrf.mxu0
    %431 = vdwg.mxu0
    %v432 = vtanh.pop %v429
    %433 = vmatprep.subr.mxu0 0.0
    %434 = vmatpush1.msra.mxu0 %v72
    %435 = vmatprep.subr.mxu0 0.0
    %436 = vmatpush1.msra.mxu0 %v71
    %437 = vmatprep.subr.mxu0 0.0
    %438 = vmatpush1.msra.mxu0 %v70
    %439 = vmatprep.subr.mxu0 0.0
    %440 = vmatpush1.msra.mxu0 %v69
    %441 = vmatprep.subr.mxu0 0.0
    %442 = vmatpush1.msra.mxu0 %v68
    %443 = vmatprep.subr.mxu0 0.0
    %444 = vmatpush1.msra.mxu0 %v67
    %445 = vmatprep.subr.mxu0 0.0
    %446 = vmatpush1.msra.mxu0 %v66
    %447 = vmatprep.subr.mxu0 0.0
    %448 = vmatpush1.msra.mxu0 %v65
    %449 = vmatprep.subr.mxu0 0.0
    %450 = vmatpush1.msra.mxu0 %v64
    %451 = vmatprep.subr.mxu0 0.0
    %452 = vmatpush1.msra.mxu0 %v63
    %453 = vmatprep.subr.mxu0 0.0
    %454 = vmatpush1.msra.mxu0 %v62
    %455 = vmatprep.subr.mxu0 0.0
    %456 = vmatpush1.msra.mxu0 %v61
    %457 = vmatprep.subr.mxu0 0.0
    %458 = vmatpush1.msra.mxu0 %v60
    %459 = vmatprep.subr.mxu0 0.0
    %460 = vmatpush1.msra.mxu0 %v59
    %461 = vmatprep.subr.mxu0 0.0
    %462 = vmatpush1.msra.mxu0 %v58
    %463 = vmatprep.subr.mxu0 0.0
    %464 = vmatpush1.msra.mxu0 %v57
    %465 = vmatprep.subr.mxu0 0.0
    %466 = vmatpush2.msra.mxu0 0.0
    %467 = vmatprep.subr.mxu0 0.0
    %468 = vmatpush2.msra.mxu0 0.0
    %469 = vmatprep.subr.mxu0 0.0
    %470 = vmatpush2.msra.mxu0 0.0
    %471 = vmatprep.subr.mxu0 0.0
    %472 = vmatpush2.msra.mxu0 0.0
    %473 = vmatprep.subr.mxu0 0.0
    %474 = vmatpush2.msra.mxu0 0.0
    %475 = vmatprep.subr.mxu0 0.0
    %476 = vmatpush2.msra.mxu0 0.0
    %477 = vmatprep.subr.mxu0 0.0
    %478 = vmatpush2.msra.mxu0 0.0
    %479 = vmatprep.subr.mxu0 0.0
    %480 = vmatpush2.msra.mxu0 0.0
    %481 = vmatprep.subr.mxu0 0.0
    %482 = vmatpush2.msra.mxu0 0.0
    %483 = vmatprep.subr.mxu0 0.0
    %484 = vmatpush2.msra.mxu0 0.0
    %485 = vmatprep.subr.mxu0 0.0
    %486 = vmatpush2.msra.mxu0 0.0
    %487 = vmatprep.subr.mxu0 0.0
    %488 = vmatpush2.msra.mxu0 0.0
    %489 = vmatprep.subr.mxu0 0.0
    %490 = vmatpush2.msra.mxu0 0.0
    %491 = vmatprep.subr.mxu0 0.0
    %492 = vmatpush2.msra.mxu0 0.0
    %493 = vmatprep.subr.mxu0 0.0
    %494 = vmatpush2.msra.mxu0 0.0
    %495 = vmatprep.subr.mxu0 0.0
    %496 = vmatpush2.msra.mxu0 0.0
    %497 = vmatprep.mubr.f32.mxu0 0.0
    %498 = vmatmul.mubr.f32.gmra.mxu0 %v432
    %v499 = vpop.f32.mrf.mxu0
    %v500 = vadd.f32 0.0, %v499
    %v501 = vpop.f32.mrf.mxu0
    %502 = vdwg.mxu0
    %v503 = vadd.f32 %v290, %v500
    %v504 = vadd.f32 %v503, %v75
    %505 = vmatprep.subr.mxu0 0.0
    %506 = vmatpush1.msra.mxu0 %v40
    %507 = vmatprep.subr.mxu0 0.0
    %508 = vmatpush1.msra.mxu0 %v39
    %509 = vmatprep.subr.mxu0 0.0
    %510 = vmatpush1.msra.mxu0 %v38
    %511 = vmatprep.subr.mxu0 0.0
    %512 = vmatpush1.msra.mxu0 %v37
    %513 = vmatprep.subr.mxu0 0.0
    %514 = vmatpush1.msra.mxu0 %v36
    %515 = vmatprep.subr.mxu0 0.0
    %516 = vmatpush1.msra.mxu0 %v35
    %517 = vmatprep.subr.mxu0 0.0
    %518 = vmatpush1.msra.mxu0 %v34
    %519 = vmatprep.subr.mxu0 0.0
    %520 = vmatpush1.msra.mxu0 %v33
    %521 = vmatprep.subr.mxu0 0.0
    %522 = vmatpush1.msra.mxu0 %v32
    %523 = vmatprep.subr.mxu0 0.0
    %524 = vmatpush1.msra.mxu0 %v31
    %525 = vmatprep.subr.mxu0 0.0
    %526 = vmatpush1.msra.mxu0 %v30
    %527 = vmatprep.subr.mxu0 0.0
    %528 = vmatpush1.msra.mxu0 %v29
    %529 = vmatprep.subr.mxu0 0.0
    %530 = vmatpush1.msra.mxu0 %v28
    %531 = vmatprep.subr.mxu0 0.0
    %532 = vmatpush1.msra.mxu0 %v27
    %533 = vmatprep.subr.mxu0 0.0
    %534 = vmatpush1.msra.mxu0 %v26
    %535 = vmatprep.subr.mxu0 0.0
    %536 = vmatpush1.msra.mxu0 %v25
    %537 = vmatprep.subr.mxu0 0.0
    %538 = vmatpush2.msra.mxu0 0.0
    %539 = vmatprep.subr.mxu0 0.0
    %540 = vmatpush2.msra.mxu0 0.0
    %541 = vmatprep.subr.mxu0 0.0
    %542 = vmatpush2.msra.mxu0 0.0
    %543 = vmatprep.subr.mxu0 0.0
    %544 = vmatpush2.msra.mxu0 0.0
    %545 = vmatprep.subr.mxu0 0.0
    %546 = vmatpush2.msra.mxu0 0.0
    %547 = vmatprep.subr.mxu0 0.0
    %548 = vmatpush2.msra.mxu0 0.0
    %549 = vmatprep.subr.mxu0 0.0
    %550 = vmatpush2.msra.mxu0 0.0
    %551 = vmatprep.subr.mxu0 0.0
    %552 = vmatpush2.msra.mxu0 0.0
    %553 = vmatprep.subr.mxu0 0.0
    %554 = vmatpush2.msra.mxu0 0.0
    %555 = vmatprep.subr.mxu0 0.0
    %556 = vmatpush2.msra.mxu0 0.0
    %557 = vmatprep.subr.mxu0 0.0
    %558 = vmatpush2.msra.mxu0 0.0
    %559 = vmatprep.subr.mxu0 0.0
    %560 = vmatpush2.msra.mxu0 0.0
    %561 = vmatprep.subr.mxu0 0.0
    %562 = vmatpush2.msra.mxu0 0.0
    %563 = vmatprep.subr.mxu0 0.0
    %564 = vmatpush2.msra.mxu0 0.0
    %565 = vmatprep.subr.mxu0 0.0
    %566 = vmatpush2.msra.mxu0 0.0
    %567 = vmatprep.subr.mxu0 0.0
    %568 = vmatpush2.msra.mxu0 0.0
    %569 = vmatprep.mubr.f32.mxu0 0.0
    %570 = vmatmul.mubr.f32.gmra.mxu0 %v504
    %v571 = vpop.f32.mrf.mxu0
    %v572 = vadd.f32 %v73, %v571
    %v573 = vpop.f32.mrf.mxu0
    %574 = vdwg.mxu0
    %v575 = vtanh.pop %v572
    %576 = vmatprep.subr.mxu0 0.0
    %577 = vmatpush1.msra.mxu0 %v56
    %578 = vmatprep.subr.mxu0 0.0
    %579 = vmatpush1.msra.mxu0 %v55
    %580 = vmatprep.subr.mxu0 0.0
    %581 = vmatpush1.msra.mxu0 %v54
    %582 = vmatprep.subr.mxu0 0.0
    %583 = vmatpush1.msra.mxu0 %v53
    %584 = vmatprep.subr.mxu0 0.0
    %585 = vmatpush1.msra.mxu0 %v52
    %586 = vmatprep.subr.mxu0 0.0
    %587 = vmatpush1.msra.mxu0 %v51
    %588 = vmatprep.subr.mxu0 0.0
    %589 = vmatpush1.msra.mxu0 %v50
    %590 = vmatprep.subr.mxu0 0.0
    %591 = vmatpush1.msra.mxu0 %v49
    %592 = vmatprep.subr.mxu0 0.0
    %593 = vmatpush1.msra.mxu0 %v48
    %594 = vmatprep.subr.mxu0 0.0
    %595 = vmatpush1.msra.mxu0 %v47
    %596 = vmatprep.subr.mxu0 0.0
    %597 = vmatpush1.msra.mxu0 %v46
    %598 = vmatprep.subr.mxu0 0.0
    %599 = vmatpush1.msra.mxu0 %v45
    %600 = vmatprep.subr.mxu0 0.0
    %601 = vmatpush1.msra.mxu0 %v44
    %602 = vmatprep.subr.mxu0 0.0
    %603 = vmatpush1.msra.mxu0 %v43
    %604 = vmatprep.subr.mxu0 0.0
    %605 = vmatpush1.msra.mxu0 %v42
    %606 = vmatprep.subr.mxu0 0.0
    %607 = vmatpush1.msra.mxu0 %v41
    %608 = vmatprep.subr.mxu0 0.0
    %609 = vmatpush2.msra.mxu0 0.0
    %610 = vmatprep.subr.mxu0 0.0
    %611 = vmatpush2.msra.mxu0 0.0
    %612 = vmatprep.subr.mxu0 0.0
    %613 = vmatpush2.msra.mxu0 0.0
    %614 = vmatprep.subr.mxu0 0.0
    %615 = vmatpush2.msra.mxu0 0.0
    %616 = vmatprep.subr.mxu0 0.0
    %617 = vmatpush2.msra.mxu0 0.0
    %618 = vmatprep.subr.mxu0 0.0
    %619 = vmatpush2.msra.mxu0 0.0
    %620 = vmatprep.subr.mxu0 0.0
    %621 = vmatpush2.msra.mxu0 0.0
    %622 = vmatprep.subr.mxu0 0.0
    %623 = vmatpush2.msra.mxu0 0.0
    %624 = vmatprep.subr.mxu0 0.0
    %625 = vmatpush2.msra.mxu0 0.0
    %626 = vmatprep.subr.mxu0 0.0
    %627 = vmatpush2.msra.mxu0 0.0
    %628 = vmatprep.subr.mxu0 0.0
    %629 = vmatpush2.msra.mxu0 0.0
    %630 = vmatprep.subr.mxu0 0.0
    %631 = vmatpush2.msra.mxu0 0.0
    %632 = vmatprep.subr.mxu0 0.0
    %633 = vmatpush2.msra.mxu0 0.0
    %634 = vmatprep.subr.mxu0 0.0
    %635 = vmatpush2.msra.mxu0 0.0
    %636 = vmatprep.subr.mxu0 0.0
    %637 = vmatpush2.msra.mxu0 0.0
    %638 = vmatprep.subr.mxu0 0.0
    %639 = vmatpush2.msra.mxu0 0.0
    %640 = vmatprep.mubr.f32.mxu0 0.0
    %641 = vmatmul.mubr.f32.gmra.mxu0 %v575
    %v642 = vpop.f32.mrf.mxu0
    %v643 = vadd.f32 %v74, %v642
    %v644 = vpop.f32.mrf.mxu0
    %645 = vdwg.mxu0
    %v646 = vtanh.pop %v643
    %647 = vmatprep.subr.mxu0 0.0
    %648 = vmatpush1.msra.mxu0 %v72
    %649 = vmatprep.subr.mxu0 0.0
    %650 = vmatpush1.msra.mxu0 %v71
    %651 = vmatprep.subr.mxu0 0.0
    %652 = vmatpush1.msra.mxu0 %v70
    %653 = vmatprep.subr.mxu0 0.0
    %654 = vmatpush1.msra.mxu0 %v69
    %655 = vmatprep.subr.mxu0 0.0
    %656 = vmatpush1.msra.mxu0 %v68
    %657 = vmatprep.subr.mxu0 0.0
    %658 = vmatpush1.msra.mxu0 %v67
    %659 = vmatprep.subr.mxu0 0.0
    %660 = vmatpush1.msra.mxu0 %v66
    %661 = vmatprep.subr.mxu0 0.0
    %662 = vmatpush1.msra.mxu0 %v65
    %663 = vmatprep.subr.mxu0 0.0
    %664 = vmatpush1.msra.mxu0 %v64
    %665 = vmatprep.subr.mxu0 0.0
    %666 = vmatpush1.msra.mxu0 %v63
    %667 = vmatprep.subr.mxu0 0.0
    %668 = vmatpush1.msra.mxu0 %v62
    %669 = vmatprep.subr.mxu0 0.0
    %670 = vmatpush1.msra.mxu0 %v61
    %671 = vmatprep.subr.mxu0 0.0
    %672 = vmatpush1.msra.mxu0 %v60
    %673 = vmatprep.subr.mxu0 0.0
    %674 = vmatpush1.msra.mxu0 %v59
    %675 = vmatprep.subr.mxu0 0.0
    %676 = vmatpush1.msra.mxu0 %v58
    %677 = vmatprep.subr.mxu0 0.0
    %678 = vmatpush1.msra.mxu0 %v57
    %679 = vmatprep.subr.mxu0 0.0
    %680 = vmatpush2.msra.mxu0 0.0
    %681 = vmatprep.subr.mxu0 0.0
    %682 = vmatpush2.msra.mxu0 0.0
    %683 = vmatprep.subr.mxu0 0.0
    %684 = vmatpush2.msra.mxu0 0.0
    %685 = vmatprep.subr.mxu0 0.0
    %686 = vmatpush2.msra.mxu0 0.0
    %687 = vmatprep.subr.mxu0 0.0
    %688 = vmatpush2.msra.mxu0 0.0
    %689 = vmatprep.subr.mxu0 0.0
    %690 = vmatpush2.msra.mxu0 0.0
    %691 = vmatprep.subr.mxu0 0.0
    %692 = vmatpush2.msra.mxu0 0.0
    %693 = vmatprep.subr.mxu0 0.0
    %694 = vmatpush2.msra.mxu0 0.0
    %695 = vmatprep.subr.mxu0 0.0
    %696 = vmatpush2.msra.mxu0 0.0
    %697 = vmatprep.subr.mxu0 0.0
    %698 = vmatpush2.msra.mxu0 0.0
    %699 = vmatprep.subr.mxu0 0.0
    %700 = vmatpush2.msra.mxu0 0.0
    %701 = vmatprep.subr.mxu0 0.0
    %702 = vmatpush2.msra.mxu0 0.0
    %703 = vmatprep.subr.mxu0 0.0
    %704 = vmatpush2.msra.mxu0 0.0
    %705 = vmatprep.subr.mxu0 0.0
    %706 = vmatpush2.msra.mxu0 0.0
    %707 = vmatprep.subr.mxu0 0.0
    %708 = vmatpush2.msra.mxu0 0.0
    %709 = vmatprep.subr.mxu0 0.0
    %710 = vmatpush2.msra.mxu0 0.0
    %711 = vmatprep.mubr.f32.mxu0 0.0
    %712 = vmatmul.mubr.f32.gmra.mxu0 %v646
    %v713 = vpop.f32.mrf.mxu0
    %v714 = vadd.f32 0.0, %v713
    %v715 = vpop.f32.mrf.mxu0
    %716 = vdwg.mxu0
    %v717 = vadd.f32 %v504, %v714
    %v718 = vadd.f32 %v717, %v75
    %719 = vmatprep.subr.mxu0 0.0
    %720 = vmatpush1.msra.mxu0 %v40
    %721 = vmatprep.subr.mxu0 0.0
    %722 = vmatpush1.msra.mxu0 %v39
    %723 = vmatprep.subr.mxu0 0.0
    %724 = vmatpush1.msra.mxu0 %v38
    %725 = vmatprep.subr.mxu0 0.0
    %726 = vmatpush1.msra.mxu0 %v37
    %727 = vmatprep.subr.mxu0 0.0
    %728 = vmatpush1.msra.mxu0 %v36
    %729 = vmatprep.subr.mxu0 0.0
    %730 = vmatpush1.msra.mxu0 %v35
    %731 = vmatprep.subr.mxu0 0.0
    %732 = vmatpush1.msra.mxu0 %v34
    %733 = vmatprep.subr.mxu0 0.0
    %734 = vmatpush1.msra.mxu0 %v33
    %735 = vmatprep.subr.mxu0 0.0
    %736 = vmatpush1.msra.mxu0 %v32
    %737 = vmatprep.subr.mxu0 0.0
    %738 = vmatpush1.msra.mxu0 %v31
    %739 = vmatprep.subr.mxu0 0.0
    %740 = vmatpush1.msra.mxu0 %v30
    %741 = vmatprep.subr.mxu0 0.0
    %742 = vmatpush1.msra.mxu0 %v29
    %743 = vmatprep.subr.mxu0 0.0
    %744 = vmatpush1.msra.mxu0 %v28
    %745 = vmatprep.subr.mxu0 0.0
    %746 = vmatpush1.msra.mxu0 %v27
    %747 = vmatprep.subr.mxu0 0.0
    %748 = vmatpush1.msra.mxu0 %v26
    %749 = vmatprep.subr.mxu0 0.0
    %750 = vmatpush1.msra.mxu0 %v25
    %751 = vmatprep.subr.mxu0 0.0
    %752 = vmatpush2.msra.mxu0 0.0
    %753 = vmatprep.subr.mxu0 0.0
    %754 = vmatpush2.msra.mxu0 0.0
    %755 = vmatprep.subr.mxu0 0.0
    %756 = vmatpush2.msra.mxu0 0.0
    %757 = vmatprep.subr.mxu0 0.0
    %758 = vmatpush2.msra.mxu0 0.0
    %759 = vmatprep.subr.mxu0 0.0
    %760 = vmatpush2.msra.mxu0 0.0
    %761 = vmatprep.subr.mxu0 0.0
    %762 = vmatpush2.msra.mxu0 0.0
    %763 = vmatprep.subr.mxu0 0.0
    %764 = vmatpush2.msra.mxu0 0.0
    %765 = vmatprep.subr.mxu0 0.0
    %766 = vmatpush2.msra.mxu0 0.0
    %767 = vmatprep.subr.mxu0 0.0
    %768 = vmatpush2.msra.mxu0 0.0
    %769 = vmatprep.subr.mxu0 0.0
    %770 = vmatpush2.msra.mxu0 0.0
    %771 = vmatprep.subr.mxu0 0.0
    %772 = vmatpush2.msra.mxu0 0.0
    %773 = vmatprep.subr.mxu0 0.0
    %774 = vmatpush2.msra.mxu0 0.0
    %775 = vmatprep.subr.mxu0 0.0
    %776 = vmatpush2.msra.mxu0 0.0
    %777 = vmatprep.subr.mxu0 0.0
    %778 = vmatpush2.msra.mxu0 0.0
    %779 = vmatprep.subr.mxu0 0.0
    %780 = vmatpush2.msra.mxu0 0.0
    %781 = vmatprep.subr.mxu0 0.0
    %782 = vmatpush2.msra.mxu0 0.0
    %783 = vmatprep.mubr.f32.mxu0 0.0
    %784 = vmatmul.mubr.f32.gmra.mxu0 %v718
    %v785 = vpop.f32.mrf.mxu0
    %v786 = vadd.f32 %v73, %v785
    %v787 = vpop.f32.mrf.mxu0
    %788 = vdwg.mxu0
    %v789 = vtanh.pop %v786
    %790 = vmatprep.subr.mxu0 0.0
    %791 = vmatpush1.msra.mxu0 %v56
    %792 = vmatprep.subr.mxu0 0.0
    %793 = vmatpush1.msra.mxu0 %v55
    %794 = vmatprep.subr.mxu0 0.0
    %795 = vmatpush1.msra.mxu0 %v54
    %796 = vmatprep.subr.mxu0 0.0
    %797 = vmatpush1.msra.mxu0 %v53
    %798 = vmatprep.subr.mxu0 0.0
    %799 = vmatpush1.msra.mxu0 %v52
    %800 = vmatprep.subr.mxu0 0.0
    %801 = vmatpush1.msra.mxu0 %v51
    %802 = vmatprep.subr.mxu0 0.0
    %803 = vmatpush1.msra.mxu0 %v50
    %804 = vmatprep.subr.mxu0 0.0
    %805 = vmatpush1.msra.mxu0 %v49
    %806 = vmatprep.subr.mxu0 0.0
    %807 = vmatpush1.msra.mxu0 %v48
    %808 = vmatprep.subr.mxu0 0.0
    %809 = vmatpush1.msra.mxu0 %v47
    %810 = vmatprep.subr.mxu0 0.0
    %811 = vmatpush1.msra.mxu0 %v46
    %812 = vmatprep.subr.mxu0 0.0
    %813 = vmatpush1.msra.mxu0 %v45
    %814 = vmatprep.subr.mxu0 0.0
    %815 = vmatpush1.msra.mxu0 %v44
    %816 = vmatprep.subr.mxu0 0.0
    %817 = vmatpush1.msra.mxu0 %v43
    %818 = vmatprep.subr.mxu0 0.0
    %819 = vmatpush1.msra.mxu0 %v42
    %820 = vmatprep.subr.mxu0 0.0
    %821 = vmatpush1.msra.mxu0 %v41
    %822 = vmatprep.subr.mxu0 0.0
    %823 = vmatpush2.msra.mxu0 0.0
    %824 = vmatprep.subr.mxu0 0.0
    %825 = vmatpush2.msra.mxu0 0.0
    %826 = vmatprep.subr.mxu0 0.0
    %827 = vmatpush2.msra.mxu0 0.0
    %828 = vmatprep.subr.mxu0 0.0
    %829 = vmatpush2.msra.mxu0 0.0
    %830 = vmatprep.subr.mxu0 0.0
    %831 = vmatpush2.msra.mxu0 0.0
    %832 = vmatprep.subr.mxu0 0.0
    %833 = vmatpush2.msra.mxu0 0.0
    %834 = vmatprep.subr.mxu0 0.0
    %835 = vmatpush2.msra.mxu0 0.0
    %836 = vmatprep.subr.mxu0 0.0
    %837 = vmatpush2.msra.mxu0 0.0
    %838 = vmatprep.subr.mxu0 0.0
    %839 = vmatpush2.msra.mxu0 0.0
    %840 = vmatprep.subr.mxu0 0.0
    %841 = vmatpush2.msra.mxu0 0.0
    %842 = vmatprep.subr.mxu0 0.0
    %843 = vmatpush2.msra.mxu0 0.0
    %844 = vmatprep.subr.mxu0 0.0
    %845 = vmatpush2.msra.mxu0 0.0
    %846 = vmatprep.subr.mxu0 0.0
    %847 = vmatpush2.msra.mxu0 0.0
    %848 = vmatprep.subr.mxu0 0.0
    %849 = vmatpush2.msra.mxu0 0.0
    %850 = vmatprep.subr.mxu0 0.0
    %851 = vmatpush2.msra.mxu0 0.0
    %852 = vmatprep.subr.mxu0 0.0
    %853 = vmatpush2.msra.mxu0 0.0
    %854 = vmatprep.mubr.f32.mxu0 0.0
    %855 = vmatmul.mubr.f32.gmra.mxu0 %v789
    %v856 = vpop.f32.mrf.mxu0
    %v857 = vadd.f32 %v74, %v856
    %v858 = vpop.f32.mrf.mxu0
    %859 = vdwg.mxu0
    %v860 = vtanh.pop %v857
    %861 = vmatprep.subr.mxu0 0.0
    %862 = vmatpush1.msra.mxu0 %v72
    %863 = vmatprep.subr.mxu0 0.0
    %864 = vmatpush1.msra.mxu0 %v71
    %865 = vmatprep.subr.mxu0 0.0
    %866 = vmatpush1.msra.mxu0 %v70
    %867 = vmatprep.subr.mxu0 0.0
    %868 = vmatpush1.msra.mxu0 %v69
    %869 = vmatprep.subr.mxu0 0.0
    %870 = vmatpush1.msra.mxu0 %v68
    %871 = vmatprep.subr.mxu0 0.0
    %872 = vmatpush1.msra.mxu0 %v67
    %873 = vmatprep.subr.mxu0 0.0
    %874 = vmatpush1.msra.mxu0 %v66
    %875 = vmatprep.subr.mxu0 0.0
    %876 = vmatpush1.msra.mxu0 %v65
    %877 = vmatprep.subr.mxu0 0.0
    %878 = vmatpush1.msra.mxu0 %v64
    %879 = vmatprep.subr.mxu0 0.0
    %880 = vmatpush1.msra.mxu0 %v63
    %881 = vmatprep.subr.mxu0 0.0
    %882 = vmatpush1.msra.mxu0 %v62
    %883 = vmatprep.subr.mxu0 0.0
    %884 = vmatpush1.msra.mxu0 %v61
    %885 = vmatprep.subr.mxu0 0.0
    %886 = vmatpush1.msra.mxu0 %v60
    %887 = vmatprep.subr.mxu0 0.0
    %888 = vmatpush1.msra.mxu0 %v59
    %889 = vmatprep.subr.mxu0 0.0
    %890 = vmatpush1.msra.mxu0 %v58
    %891 = vmatprep.subr.mxu0 0.0
    %892 = vmatpush1.msra.mxu0 %v57
    %893 = vmatprep.subr.mxu0 0.0
    %894 = vmatpush2.msra.mxu0 0.0
    %895 = vmatprep.subr.mxu0 0.0
    %896 = vmatpush2.msra.mxu0 0.0
    %897 = vmatprep.subr.mxu0 0.0
    %898 = vmatpush2.msra.mxu0 0.0
    %899 = vmatprep.subr.mxu0 0.0
    %900 = vmatpush2.msra.mxu0 0.0
    %901 = vmatprep.subr.mxu0 0.0
    %902 = vmatpush2.msra.mxu0 0.0
    %903 = vmatprep.subr.mxu0 0.0
    %904 = vmatpush2.msra.mxu0 0.0
    %905 = vmatprep.subr.mxu0 0.0
    %906 = vmatpush2.msra.mxu0 0.0
    %907 = vmatprep.subr.mxu0 0.0
    %908 = vmatpush2.msra.mxu0 0.0
    %909 = vmatprep.subr.mxu0 0.0
    %910 = vmatpush2.msra.mxu0 0.0
    %911 = vmatprep.subr.mxu0 0.0
    %912 = vmatpush2.msra.mxu0 0.0
    %913 = vmatprep.subr.mxu0 0.0
    %914 = vmatpush2.msra.mxu0 0.0
    %915 = vmatprep.subr.mxu0 0.0
    %916 = vmatpush2.msra.mxu0 0.0
    %917 = vmatprep.subr.mxu0 0.0
    %918 = vmatpush2.msra.mxu0 0.0
    %919 = vmatprep.subr.mxu0 0.0
    %920 = vmatpush2.msra.mxu0 0.0
    %921 = vmatprep.subr.mxu0 0.0
    %922 = vmatpush2.msra.mxu0 0.0
    %923 = vmatprep.subr.mxu0 0.0
    %924 = vmatpush2.msra.mxu0 0.0
    %925 = vmatprep.mubr.f32.mxu0 0.0
    %926 = vmatmul.mubr.f32.gmra.mxu0 %v860
    %v927 = vpop.f32.mrf.mxu0
    %v928 = vadd.f32 0.0, %v927
    %v929 = vpop.f32.mrf.mxu0
    %930 = vdwg.mxu0
    %v931 = vadd.f32 %v718, %v928
    %v932 = vadd.f32 %v931, %v75
    %933 = vst [vmem:[%s2] sm:$0xff] %v932
    // Predicated region
    $region14: #{resnet_forward.1} parent=1 // pred_check
      _
    $region15: #{resnet_forward.1} parent=1 // pred_check_branch
      %935 = sbr.rel (0) target = $region17
    $region16: #{resnet_forward.1} parent=1 // pred_region
      _
    $region17: #{resnet_forward.1} parent=1 // pred_fallthru
      _
    // Predicated region
    $region18: #{resnet_forward.1} parent=1 // pred_check
      _
    $region19: #{resnet_forward.1} parent=1 // pred_check_branch
      %937 = sbr.rel (0) target = $region21
    $region20: #{resnet_forward.1} parent=1 // pred_region
      _
    $region21: #{resnet_forward.1} parent=1 // pred_fallthru
      _
    %938 = vsyncpa [#allocation3], 1

</llo_original>
